<compile_context>
chip_gen: v7x
topology: tpu7x:2x2x1
jax: 0.10.0
libtpu: 0.0.40
codegen_flags: <defaults>
</compile_context>

<pallas_src>
import functools

import jax
import jax.numpy as jnp
from jax.experimental import pallas as pl
from jax.experimental.pallas import tpu as pltpu

BN_EPS = 1e-5
LEAKY_SLOPE = 0.01
LANE = 128


def _round_up(x, m):
    return ((x + m - 1) // m) * m


def _pad2(a, rows, cols, dtype):
    out = jnp.zeros((rows, cols), dtype)
    return out.at[: a.shape[0], : a.shape[1]].set(a.astype(dtype))


def _layer_kernel(n_real, tile_n, has_bn, want_stats, *refs):
    """One fused layer:  [BN-apply -> LeakyReLU ->] Linear [-> partial stats].

    refs (in order):
      h_ref, [scale_ref, shift_ref,] w_ref(bf16), b_ref(f32), o_ref, [psum_ref]
    """
    if has_bn:
        h_ref, scale_ref, shift_ref, w_ref, b_ref = refs[:5]
        rest = refs[5:]
    else:
        h_ref, w_ref, b_ref = refs[:3]
        rest = refs[3:]
    o_ref = rest[0]

    h = h_ref[...].astype(jnp.float32)
    if has_bn:
        # BatchNorm folded into a single FMA: scale/shift precomputed from the
        # *global* batch statistics in the wrapper.  Then LeakyReLU.
        z = h * scale_ref[...] + shift_ref[...]
        z = jnp.where(z >= 0.0, z, LEAKY_SLOPE * z)
        # Dropout(p=0.0) is the identity.
        # TODO(synk): nonzero dropout would need pltpu.prng_random_bits masking.
    else:
        z = h

    # bf16 operands on the MXU, f32 accumulation; bias add in f32.
    out = jnp.dot(z.astype(jnp.bfloat16), w_ref[...],
                  preferred_element_type=jnp.float32) + b_ref[...]
    o_ref[...] = out

    if want_stats:
        psum_ref = rest[1]
        # Per-tile partial sums for the *next* layer's BatchNorm, with padded
        # rows masked out so the global statistics stay exact.
        i = pl.program_id(0)
        rows = jax.lax.broadcasted_iota(jnp.int32, out.shape, 0) + i * tile_n
        om = jnp.where(rows < n_real, out, 0.0)
        s1 = jnp.sum(om, axis=0, keepdims=True)        # sum(h)
        s2 = jnp.sum(om * out, axis=0, keepdims=True)  # sum(h*h)
        psum_ref[...] = jnp.concatenate([s1, s2], axis=0)[None]


def mlp_forward(x, params, n_layers, out_channels, *, max_tile_n=512):
    """x: [N, in_channels] f32.  params: flat list as produced by init_params."""
    N, c_in = x.shape
    hidden = params[0].shape[1]

    # Row tiling: largest tile up to max_tile_n; tiny demo shapes collapse to a
    # single grid step (per-step overhead dominates below ~512 rows anyway).
    tile_n = min(max_tile_n, _round_up(N, 16))
    n_pad = _round_up(N, tile_n)
    num_tiles = n_pad // tile_n

    c_in_p = _round_up(c_in, LANE)
    hid_p = _round_up(hidden, LANE)

    x_p = jnp.zeros((n_pad, c_in_p), jnp.float32).at[:N, :c_in].set(x)

    cparams = pltpu.CompilerParams(
        dimension_semantics=("parallel",),
        vmem_limit_bytes=32 * 1024 * 1024,  # fits v7x's 64 MiB/TC budget too
    )

    def run_layer(h_in, c_inp, c_outp, w, b, scale=None, shift=None,
                  want_stats=True):
        has_bn = scale is not None
        kern = functools.partial(_layer_kernel, N, tile_n, has_bn, want_stats)

        in_specs = [pl.BlockSpec((tile_n, c_inp), lambda i: (i, 0))]
        operands = [h_in]
        if has_bn:
            in_specs += [pl.BlockSpec((1, c_inp), lambda i: (0, 0)),
                         pl.BlockSpec((1, c_inp), lambda i: (0, 0))]
            operands += [scale, shift]
        in_specs += [pl.BlockSpec((c_inp, c_outp), lambda i: (0, 0)),
                     pl.BlockSpec((1, c_outp), lambda i: (0, 0))]
        operands += [w, b]

        out_shape = [jax.ShapeDtypeStruct((n_pad, c_outp), jnp.float32)]
        out_specs = [pl.BlockSpec((tile_n, c_outp), lambda i: (i, 0))]
        if want_stats:
            out_shape.append(
                jax.ShapeDtypeStruct((num_tiles, 2, c_outp), jnp.float32))
            out_specs.append(pl.BlockSpec((1, 2, c_outp), lambda i: (i, 0, 0)))

        return pl.pallas_call(
            kern,
            grid=(num_tiles,),
            in_specs=in_specs,
            out_specs=out_specs,
            out_shape=out_shape,
            compiler_params=cparams,
        )(*operands)

    # Layer 0: Linear(in_channels, hidden_channels)
    w0 = _pad2(params[0], c_in_p, hid_p, jnp.bfloat16)
    b0 = _pad2(params[1], 1, hid_p, jnp.float32)
    res = run_layer(x_p, c_in_p, hid_p, w0, b0, want_stats=(n_layers > 1))
    if n_layers == 1:
        return res[0][:N, :hidden]
    h, psums = res

    idx = 2
    c_prev_p = hid_p
    for layer in range(1, n_layers):
        gamma, beta, w, b = params[idx:idx + 4]
        idx += 4
        is_last = layer == n_layers - 1
        c_out = w.shape[1]
        c_out_p = _round_up(c_out, LANE)

        # Exact global BatchNorm stats from per-tile partial sums, folded into
        # one scale/shift (one-pass biased variance).
        sums = jnp.sum(psums, axis=0)                  # (2, c_prev_p)
        mean = sums[0:1] / float(N)
        mean_sq = sums[1:2] / float(N)
        var = jnp.maximum(mean_sq - mean * mean, 0.0)
        scale = _pad2(gamma, 1, c_prev_p, jnp.float32) * jax.lax.rsqrt(var + BN_EPS)
        shift = _pad2(beta, 1, c_prev_p, jnp.float32) - mean * scale

        w_p = _pad2(w, c_prev_p, c_out_p, jnp.bfloat16)
        b_p = _pad2(b, 1, c_out_p, jnp.float32)
        res = run_layer(h, c_prev_p, c_out_p, w_p, b_p, scale, shift,
                        want_stats=not is_last)
        if is_last:
            h = res[0]
        else:
            h, psums = res
        c_prev_p = c_out_p

    return h[:N, :out_channels]


def init_params(key, in_channels, hidden_channels, out_channels, n_layers):
    """PyTorch-like uniform fan-in init.  Linear weights stored transposed
    [C_in, C_out]; biases / BN params kept 2-D [1, C] (TPU layout friendly)."""
    params = []

    def linear(k, c_in, c_out):
        kw, kb = jax.random.split(k)
        bound = 1.0 / jnp.sqrt(jnp.float32(c_in))
        w = jax.random.uniform(kw, (c_in, c_out), jnp.float32, -bound, bound)
        b = jax.random.uniform(kb, (1, c_out), jnp.float32, -bound, bound)
        return w, b

    keys = jax.random.split(key, n_layers)
    w, b = linear(keys[0], in_channels, hidden_channels)
    params += [w, b]
    for i in range(1, n_layers):
        c_out = hidden_channels if i < n_layers - 1 else out_channels
        gamma = jnp.ones((1, hidden_channels), jnp.float32)
        beta = jnp.zeros((1, hidden_channels), jnp.float32)
        w, b = linear(keys[i], hidden_channels, c_out)
        params += [gamma, beta, w, b]
    return params


def reference_forward(x, params, n_layers):
    """Pure-JAX reference with matching numerics (bf16 MXU matmuls, f32 BN)."""
    def mm(a, w):
        return jnp.dot(a.astype(jnp.bfloat16), w.astype(jnp.bfloat16),
                       preferred_element_type=jnp.float32)

    h = mm(x, params[0]) + params[1]
    idx = 2
    for _ in range(1, n_layers):
        gamma, beta, w, b = params[idx:idx + 4]
        idx += 4
        mean = jnp.mean(h, axis=0, keepdims=True)
        var = jnp.maximum(jnp.mean(h * h, axis=0, keepdims=True) - mean * mean, 0.0)
        scale = gamma * jax.lax.rsqrt(var + BN_EPS)
        shift = beta - mean * scale
        h = h * scale + shift
        h = jnp.where(h >= 0.0, h, LEAKY_SLOPE * h)
        h = mm(h, w) + b
    return h


if __name__ == "__main__":
    in_channels, hidden_channels, out_channels, n_layers = 16, 32, 8, 3
    N = 64  # number of nodes / rows

    key = jax.random.PRNGKey(0)
    kx, kp = jax.random.split(key)
    x = jax.random.normal(kx, (N, in_channels), jnp.float32)
    params = init_params(kp, in_channels, hidden_channels, out_channels, n_layers)

    fwd = jax.jit(functools.partial(mlp_forward, n_layers=n_layers,
                                    out_channels=out_channels))
    out = jax.block_until_ready(fwd(x, params))

    ref = reference_forward(x, params, n_layers)
    assert out.shape == (N, out_channels)
    assert jnp.allclose(out, ref, atol=1e-2, rtol=1e-2), (
        "mismatch vs reference, max abs diff = "
        f"{float(jnp.max(jnp.abs(out - ref)))}")

    print("KERNEL_OK")
</pallas_src>

<mosaic_0001>
module attributes {stable_mosaic.version = 11 : i64} {
  func.func @_layer_kernel(%arg0: i32, %arg1: memref<64x128xf32, #tpu.memory_space<vmem>>, %arg2: memref<128x128xbf16, #tpu.memory_space<vmem>>, %arg3: memref<1x128xf32, #tpu.memory_space<vmem>>, %arg4: memref<64x128xf32, #tpu.memory_space<vmem>>, %arg5: memref<1x2x128xf32, #tpu.memory_space<vmem>>) attributes {dimension_semantics = [#tpu.dimension_semantics<parallel>], iteration_bounds = array<i64: 1>, scalar_prefetch = 0 : i64, scratch_operands = 0 : i64, tpu.core_type = #tpu.core_type<tc>, window_params = [{transform_indices = @transform_0, window_bounds = array<i64: 64, 128>}, {pipeline_mode = #tpu.pipeline_mode<synchronous>, transform_indices = @transform_1, window_bounds = array<i64: 128, 128>}, {pipeline_mode = #tpu.pipeline_mode<synchronous>, transform_indices = @transform_2, window_bounds = array<i64: 1, 128>}, {transform_indices = @transform_3, window_bounds = array<i64: 64, 128>}, {transform_indices = @transform_4, window_bounds = array<i64: 1, 2, 128>}]} {
    %c0 = arith.constant 0 : index
    %c0_0 = arith.constant 0 : index
    %0 = vector.load %arg1[%c0, %c0_0] : memref<64x128xf32, #tpu.memory_space<vmem>>, vector<64x128xf32>
    %1 = arith.truncf %0 : vector<64x128xf32> to vector<64x128xbf16>
    %c0_1 = arith.constant 0 : index
    %c0_2 = arith.constant 0 : index
    %2 = vector.load %arg2[%c0_1, %c0_2] : memref<128x128xbf16, #tpu.memory_space<vmem>>, vector<128x128xbf16>
    %cst = arith.constant dense<0.000000e+00> : vector<64x128xf32>
    %3 = tpu.matmul %1, %2, %cst {dimension_numbers = #tpu.dot_dimension_numbers<[1], [0], [0], [1], [0, 0, 1, 1], [], []>} : vector<64x128xbf16>, vector<128x128xbf16>, vector<64x128xf32> -> vector<64x128xf32>
    %c0_3 = arith.constant 0 : index
    %c0_4 = arith.constant 0 : index
    %4 = vector.load %arg3[%c0_3, %c0_4] : memref<1x128xf32, #tpu.memory_space<vmem>>, vector<1x128xf32>
    %5 = vector.broadcast %4 : vector<1x128xf32> to vector<64x128xf32>
    %6 = arith.addf %3, %5 : vector<64x128xf32>
    %c0_5 = arith.constant 0 : index
    %c0_6 = arith.constant 0 : index
    %7 = vector.load %arg4[%c0_5, %c0_6] : memref<64x128xf32, #tpu.memory_space<vmem>>, vector<64x128xf32>
    tpu.vector_store %arg4[%c0_5, %c0_6], %6 {strides = array<i32>} : memref<64x128xf32, #tpu.memory_space<vmem>>, vector<64x128xf32>,
    %8 = tpu.iota {dimensions = array<i32: 0>} : vector<64x128xi32>
    %c64_i32 = arith.constant 64 : i32
    %9 = arith.muli %arg0, %c64_i32 : i32
    %10 = vector.broadcast %9 : i32 to vector<64x128xi32>
    %11 = arith.addi %8, %10 : vector<64x128xi32>
    %c64_i32_7 = arith.constant 64 : i32
    %12 = vector.broadcast %c64_i32_7 : i32 to vector<64x128xi32>
    %13 = arith.cmpi slt, %11, %12 : vector<64x128xi32>
    %cst_8 = arith.constant 0.000000e+00 : f32
    %14 = vector.broadcast %cst_8 : f32 to vector<64x128xf32>
    %15 = arith.select %13, %6, %14 : vector<64x128xi1>, vector<64x128xf32>
    %cst_9 = arith.constant dense<0.000000e+00> : vector<128xf32>
    %16 = vector.multi_reduction <add>, %15, %cst_9 [0] : vector<64x128xf32> to vector<128xf32>
    %17 = vector.shape_cast %16 : vector<128xf32> to vector<1x128xf32>
    %18 = arith.mulf %15, %6 : vector<64x128xf32>
    %cst_10 = arith.constant dense<0.000000e+00> : vector<128xf32>
    %19 = vector.multi_reduction <add>, %18, %cst_10 [0] : vector<64x128xf32> to vector<128xf32>
    %20 = vector.shape_cast %19 : vector<128xf32> to vector<1x128xf32>
    %21 = tpu.concatenate %17, %20 in 0 : vector<1x128xf32>, vector<1x128xf32> -> vector<2x128xf32>
    %22 = vector.shape_cast %21 : vector<2x128xf32> to vector<1x2x128xf32>
    %c0_11 = arith.constant 0 : index
    %c0_12 = arith.constant 0 : index
    %c0_13 = arith.constant 0 : index
    %23 = vector.load %arg5[%c0_11, %c0_12, %c0_13] : memref<1x2x128xf32, #tpu.memory_space<vmem>>, vector<1x2x128xf32>
    tpu.vector_store %arg5[%c0_11, %c0_12, %c0_13], %22 {strides = array<i32>} : memref<1x2x128xf32, #tpu.memory_space<vmem>>, vector<1x2x128xf32>,
    return
  }
  func.func @transform_0(%arg0: i32) -> (i32, i32) {
    %c0_i32 = arith.constant 0 : i32
    %c0_i32_0 = arith.constant 0 : i32
    return %arg0, %c0_i32 : i32, i32
  }
  func.func @transform_1(%arg0: i32) -> (i32, i32) {
    %c0_i32 = arith.constant 0 : i32
    %c0_i32_0 = arith.constant 0 : i32
    %c0_i32_1 = arith.constant 0 : i32
    return %c0_i32, %c0_i32_0 : i32, i32
  }
  func.func @transform_2(%arg0: i32) -> (i32, i32) {
    %c0_i32 = arith.constant 0 : i32
    %c0_i32_0 = arith.constant 0 : i32
    %c0_i32_1 = arith.constant 0 : i32
    return %c0_i32, %c0_i32_0 : i32, i32
  }
  func.func @transform_3(%arg0: i32) -> (i32, i32) {
    %c0_i32 = arith.constant 0 : i32
    %c0_i32_0 = arith.constant 0 : i32
    return %arg0, %c0_i32 : i32, i32
  }
  func.func @transform_4(%arg0: i32) -> (i32, i32, i32) {
    %c0_i32 = arith.constant 0 : i32
    %c0_i32_0 = arith.constant 0 : i32
    %c0_i32_1 = arith.constant 0 : i32
    return %arg0, %c0_i32, %c0_i32_0 : i32, i32, i32
  }
}

module attributes {stable_mosaic.version = 11 : i64} {
  func.func @_layer_kernel(%arg0: i32, %arg1: memref<64x128xf32, #tpu.memory_space<vmem>>, %arg2: memref<1x128xf32, #tpu.memory_space<vmem>>, %arg3: memref<1x128xf32, #tpu.memory_space<vmem>>, %arg4: memref<128x128xbf16, #tpu.memory_space<vmem>>, %arg5: memref<1x128xf32, #tpu.memory_space<vmem>>, %arg6: memref<64x128xf32, #tpu.memory_space<vmem>>, %arg7: memref<1x2x128xf32, #tpu.memory_space<vmem>>) attributes {dimension_semantics = [#tpu.dimension_semantics<parallel>], iteration_bounds = array<i64: 1>, scalar_prefetch = 0 : i64, scratch_operands = 0 : i64, tpu.core_type = #tpu.core_type<tc>, window_params = [{transform_indices = @transform_0, window_bounds = array<i64: 64, 128>}, {pipeline_mode = #tpu.pipeline_mode<synchronous>, transform_indices = @transform_1, window_bounds = array<i64: 1, 128>}, {pipeline_mode = #tpu.pipeline_mode<synchronous>, transform_indices = @transform_2, window_bounds = array<i64: 1, 128>}, {pipeline_mode = #tpu.pipeline_mode<synchronous>, transform_indices = @transform_3, window_bounds = array<i64: 128, 128>}, {pipeline_mode = #tpu.pipeline_mode<synchronous>, transform_indices = @transform_4, window_bounds = array<i64: 1, 128>}, {transform_indices = @transform_5, window_bounds = array<i64: 64, 128>}, {transform_indices = @transform_6, window_bounds = array<i64: 1, 2, 128>}]} {
    %c0 = arith.constant 0 : index
    %c0_0 = arith.constant 0 : index
    %0 = vector.load %arg1[%c0, %c0_0] : memref<64x128xf32, #tpu.memory_space<vmem>>, vector<64x128xf32>
    %c0_1 = arith.constant 0 : index
    %c0_2 = arith.constant 0 : index
    %1 = vector.load %arg2[%c0_1, %c0_2] : memref<1x128xf32, #tpu.memory_space<vmem>>, vector<1x128xf32>
    %2 = vector.broadcast %1 : vector<1x128xf32> to vector<64x128xf32>
    %3 = arith.mulf %0, %2 : vector<64x128xf32>
    %c0_3 = arith.constant 0 : index
    %c0_4 = arith.constant 0 : index
    %4 = vector.load %arg3[%c0_3, %c0_4] : memref<1x128xf32, #tpu.memory_space<vmem>>, vector<1x128xf32>
    %5 = vector.broadcast %4 : vector<1x128xf32> to vector<64x128xf32>
    %6 = arith.addf %3, %5 : vector<64x128xf32>
    %cst = arith.constant 0.000000e+00 : f32
    %7 = vector.broadcast %cst : f32 to vector<64x128xf32>
    %8 = arith.cmpf oge, %6, %7 : vector<64x128xf32>
    %cst_5 = arith.constant 0.00999999977 : f32
    %9 = vector.broadcast %cst_5 : f32 to vector<64x128xf32>
    %10 = arith.mulf %9, %6 : vector<64x128xf32>
    %11 = arith.select %8, %6, %10 : vector<64x128xi1>, vector<64x128xf32>
    %12 = arith.truncf %11 : vector<64x128xf32> to vector<64x128xbf16>
    %c0_6 = arith.constant 0 : index
    %c0_7 = arith.constant 0 : index
    %13 = vector.load %arg4[%c0_6, %c0_7] : memref<128x128xbf16, #tpu.memory_space<vmem>>, vector<128x128xbf16>
    %cst_8 = arith.constant dense<0.000000e+00> : vector<64x128xf32>
    %14 = tpu.matmul %12, %13, %cst_8 {dimension_numbers = #tpu.dot_dimension_numbers<[1], [0], [0], [1], [0, 0, 1, 1], [], []>} : vector<64x128xbf16>, vector<128x128xbf16>, vector<64x128xf32> -> vector<64x128xf32>
    %c0_9 = arith.constant 0 : index
    %c0_10 = arith.constant 0 : index
    %15 = vector.load %arg5[%c0_9, %c0_10] : memref<1x128xf32, #tpu.memory_space<vmem>>, vector<1x128xf32>
    %16 = vector.broadcast %15 : vector<1x128xf32> to vector<64x128xf32>
    %17 = arith.addf %14, %16 : vector<64x128xf32>
    %c0_11 = arith.constant 0 : index
    %c0_12 = arith.constant 0 : index
    %18 = vector.load %arg6[%c0_11, %c0_12] : memref<64x128xf32, #tpu.memory_space<vmem>>, vector<64x128xf32>
    tpu.vector_store %arg6[%c0_11, %c0_12], %17 {strides = array<i32>} : memref<64x128xf32, #tpu.memory_space<vmem>>, vector<64x128xf32>,
    %19 = tpu.iota {dimensions = array<i32: 0>} : vector<64x128xi32>
    %c64_i32 = arith.constant 64 : i32
    %20 = arith.muli %arg0, %c64_i32 : i32
    %21 = vector.broadcast %20 : i32 to vector<64x128xi32>
    %22 = arith.addi %19, %21 : vector<64x128xi32>
    %c64_i32_13 = arith.constant 64 : i32
    %23 = vector.broadcast %c64_i32_13 : i32 to vector<64x128xi32>
    %24 = arith.cmpi slt, %22, %23 : vector<64x128xi32>
    %cst_14 = arith.constant 0.000000e+00 : f32
    %25 = vector.broadcast %cst_14 : f32 to vector<64x128xf32>
    %26 = arith.select %24, %17, %25 : vector<64x128xi1>, vector<64x128xf32>
    %cst_15 = arith.constant dense<0.000000e+00> : vector<128xf32>
    %27 = vector.multi_reduction <add>, %26, %cst_15 [0] : vector<64x128xf32> to vector<128xf32>
    %28 = vector.shape_cast %27 : vector<128xf32> to vector<1x128xf32>
    %29 = arith.mulf %26, %17 : vector<64x128xf32>
    %cst_16 = arith.constant dense<0.000000e+00> : vector<128xf32>
    %30 = vector.multi_reduction <add>, %29, %cst_16 [0] : vector<64x128xf32> to vector<128xf32>
    %31 = vector.shape_cast %30 : vector<128xf32> to vector<1x128xf32>
    %32 = tpu.concatenate %28, %31 in 0 : vector<1x128xf32>, vector<1x128xf32> -> vector<2x128xf32>
    %33 = vector.shape_cast %32 : vector<2x128xf32> to vector<1x2x128xf32>
    %c0_17 = arith.constant 0 : index
    %c0_18 = arith.constant 0 : index
    %c0_19 = arith.constant 0 : index
    %34 = vector.load %arg7[%c0_17, %c0_18, %c0_19] : memref<1x2x128xf32, #tpu.memory_space<vmem>>, vector<1x2x128xf32>
    tpu.vector_store %arg7[%c0_17, %c0_18, %c0_19], %33 {strides = array<i32>} : memref<1x2x128xf32, #tpu.memory_space<vmem>>, vector<1x2x128xf32>,
    return
  }
  func.func @transform_0(%arg0: i32) -> (i32, i32) {
    %c0_i32 = arith.constant 0 : i32
    %c0_i32_0 = arith.constant 0 : i32
    return %arg0, %c0_i32 : i32, i32
  }
  func.func @transform_1(%arg0: i32) -> (i32, i32) {
    %c0_i32 = arith.constant 0 : i32
    %c0_i32_0 = arith.constant 0 : i32
    %c0_i32_1 = arith.constant 0 : i32
    return %c0_i32, %c0_i32_0 : i32, i32
  }
  func.func @transform_2(%arg0: i32) -> (i32, i32) {
    %c0_i32 = arith.constant 0 : i32
    %c0_i32_0 = arith.constant 0 : i32
    %c0_i32_1 = arith.constant 0 : i32
    return %c0_i32, %c0_i32_0 : i32, i32
  }
  func.func @transform_3(%arg0: i32) -> (i32, i32) {
    %c0_i32 = arith.constant 0 : i32
    %c0_i32_0 = arith.constant 0 : i32
    %c0_i32_1 = arith.constant 0 : i32
    return %c0_i32, %c0_i32_0 : i32, i32
  }
  func.func @transform_4(%arg0: i32) -> (i32, i32) {
    %c0_i32 = arith.constant 0 : i32
    %c0_i32_0 = arith.constant 0 : i32
    %c0_i32_1 = arith.constant 0 : i32
    return %c0_i32, %c0_i32_0 : i32, i32
  }
  func.func @transform_5(%arg0: i32) -> (i32, i32) {
    %c0_i32 = arith.constant 0 : i32
    %c0_i32_0 = arith.constant 0 : i32
    return %arg0, %c0_i32 : i32, i32
  }
  func.func @transform_6(%arg0: i32) -> (i32, i32, i32) {
    %c0_i32 = arith.constant 0 : i32
    %c0_i32_0 = arith.constant 0 : i32
    %c0_i32_1 = arith.constant 0 : i32
    return %arg0, %c0_i32, %c0_i32_0 : i32, i32, i32
  }
}

module attributes {stable_mosaic.version = 11 : i64} {
  func.func @_layer_kernel(%arg0: i32, %arg1: memref<64x128xf32, #tpu.memory_space<vmem>>, %arg2: memref<1x128xf32, #tpu.memory_space<vmem>>, %arg3: memref<1x128xf32, #tpu.memory_space<vmem>>, %arg4: memref<128x128xbf16, #tpu.memory_space<vmem>>, %arg5: memref<1x128xf32, #tpu.memory_space<vmem>>, %arg6: memref<64x128xf32, #tpu.memory_space<vmem>>) attributes {dimension_semantics = [#tpu.dimension_semantics<parallel>], iteration_bounds = array<i64: 1>, scalar_prefetch = 0 : i64, scratch_operands = 0 : i64, tpu.core_type = #tpu.core_type<tc>, window_params = [{transform_indices = @transform_0, window_bounds = array<i64: 64, 128>}, {pipeline_mode = #tpu.pipeline_mode<synchronous>, transform_indices = @transform_1, window_bounds = array<i64: 1, 128>}, {pipeline_mode = #tpu.pipeline_mode<synchronous>, transform_indices = @transform_2, window_bounds = array<i64: 1, 128>}, {pipeline_mode = #tpu.pipeline_mode<synchronous>, transform_indices = @transform_3, window_bounds = array<i64: 128, 128>}, {pipeline_mode = #tpu.pipeline_mode<synchronous>, transform_indices = @transform_4, window_bounds = array<i64: 1, 128>}, {transform_indices = @transform_5, window_bounds = array<i64: 64, 128>}]} {
    %c0 = arith.constant 0 : index
    %c0_0 = arith.constant 0 : index
    %0 = vector.load %arg1[%c0, %c0_0] : memref<64x128xf32, #tpu.memory_space<vmem>>, vector<64x128xf32>
    %c0_1 = arith.constant 0 : index
    %c0_2 = arith.constant 0 : index
    %1 = vector.load %arg2[%c0_1, %c0_2] : memref<1x128xf32, #tpu.memory_space<vmem>>, vector<1x128xf32>
    %2 = vector.broadcast %1 : vector<1x128xf32> to vector<64x128xf32>
    %3 = arith.mulf %0, %2 : vector<64x128xf32>
    %c0_3 = arith.constant 0 : index
    %c0_4 = arith.constant 0 : index
    %4 = vector.load %arg3[%c0_3, %c0_4] : memref<1x128xf32, #tpu.memory_space<vmem>>, vector<1x128xf32>
    %5 = vector.broadcast %4 : vector<1x128xf32> to vector<64x128xf32>
    %6 = arith.addf %3, %5 : vector<64x128xf32>
    %cst = arith.constant 0.000000e+00 : f32
    %7 = vector.broadcast %cst : f32 to vector<64x128xf32>
    %8 = arith.cmpf oge, %6, %7 : vector<64x128xf32>
    %cst_5 = arith.constant 0.00999999977 : f32
    %9 = vector.broadcast %cst_5 : f32 to vector<64x128xf32>
    %10 = arith.mulf %9, %6 : vector<64x128xf32>
    %11 = arith.select %8, %6, %10 : vector<64x128xi1>, vector<64x128xf32>
    %12 = arith.truncf %11 : vector<64x128xf32> to vector<64x128xbf16>
    %c0_6 = arith.constant 0 : index
    %c0_7 = arith.constant 0 : index
    %13 = vector.load %arg4[%c0_6, %c0_7] : memref<128x128xbf16, #tpu.memory_space<vmem>>, vector<128x128xbf16>
    %cst_8 = arith.constant dense<0.000000e+00> : vector<64x128xf32>
    %14 = tpu.matmul %12, %13, %cst_8 {dimension_numbers = #tpu.dot_dimension_numbers<[1], [0], [0], [1], [0, 0, 1, 1], [], []>} : vector<64x128xbf16>, vector<128x128xbf16>, vector<64x128xf32> -> vector<64x128xf32>
    %c0_9 = arith.constant 0 : index
    %c0_10 = arith.constant 0 : index
    %15 = vector.load %arg5[%c0_9, %c0_10] : memref<1x128xf32, #tpu.memory_space<vmem>>, vector<1x128xf32>
    %16 = vector.broadcast %15 : vector<1x128xf32> to vector<64x128xf32>
    %17 = arith.addf %14, %16 : vector<64x128xf32>
    %c0_11 = arith.constant 0 : index
    %c0_12 = arith.constant 0 : index
    %18 = vector.load %arg6[%c0_11, %c0_12] : memref<64x128xf32, #tpu.memory_space<vmem>>, vector<64x128xf32>
    tpu.vector_store %arg6[%c0_11, %c0_12], %17 {strides = array<i32>} : memref<64x128xf32, #tpu.memory_space<vmem>>, vector<64x128xf32>,
    return
  }
  func.func @transform_0(%arg0: i32) -> (i32, i32) {
    %c0_i32 = arith.constant 0 : i32
    %c0_i32_0 = arith.constant 0 : i32
    return %arg0, %c0_i32 : i32, i32
  }
  func.func @transform_1(%arg0: i32) -> (i32, i32) {
    %c0_i32 = arith.constant 0 : i32
    %c0_i32_0 = arith.constant 0 : i32
    %c0_i32_1 = arith.constant 0 : i32
    return %c0_i32, %c0_i32_0 : i32, i32
  }
  func.func @transform_2(%arg0: i32) -> (i32, i32) {
    %c0_i32 = arith.constant 0 : i32
    %c0_i32_0 = arith.constant 0 : i32
    %c0_i32_1 = arith.constant 0 : i32
    return %c0_i32, %c0_i32_0 : i32, i32
  }
  func.func @transform_3(%arg0: i32) -> (i32, i32) {
    %c0_i32 = arith.constant 0 : i32
    %c0_i32_0 = arith.constant 0 : i32
    %c0_i32_1 = arith.constant 0 : i32
    return %c0_i32, %c0_i32_0 : i32, i32
  }
  func.func @transform_4(%arg0: i32) -> (i32, i32) {
    %c0_i32 = arith.constant 0 : i32
    %c0_i32_0 = arith.constant 0 : i32
    %c0_i32_1 = arith.constant 0 : i32
    return %c0_i32, %c0_i32_0 : i32, i32
  }
  func.func @transform_5(%arg0: i32) -> (i32, i32) {
    %c0_i32 = arith.constant 0 : i32
    %c0_i32_0 = arith.constant 0 : i32
    return %arg0, %c0_i32 : i32, i32
  }
}

</mosaic_0001>

<llo_original>
// kernel: mlp_forward.5
$region0: #{mlp_forward.5}
  #allocation0 [shape = 'u32[]', space=smem, size = 0x4, offset = 0x4, fixed_abs, tag = 'smem constant byte address 0x4 - core index']
  #allocation1 [shape = 'u32[144,128]{1,0:T(1,128)}', space=vmem, size = 0x12000, scoped, tag = 'internal scratch']
  %s0 = inlined_call_operand.vmem [shape: f32[64,128], index: 0, kind: input, shape index: {}]
  %s1 = inlined_call_operand.vmem [shape: f32[1,128], index: 1, kind: input, shape index: {}]
  %s2 = inlined_call_operand.vmem [shape: f32[1,128], index: 2, kind: input, shape index: {}]
  %s3 = inlined_call_operand.vmem [shape: bf16[128,128], index: 3, kind: input, shape index: {}]
  %s4 = inlined_call_operand.vmem [shape: f32[1,128], index: 4, kind: input, shape index: {}]
  %s5 = inlined_call_operand.vmem [shape: f32[64,128], index: 5, kind: output, shape index: {}]
  %s6 = sld [smem:[#allocation0]]
  $region30: #{mlp_forward.5} parent=0
    _
  %s8 = ssub.s32 1, %s6
  %s9 = scalar_select 0, %s8, %s6
  // Predicated region
  $region2: #{mlp_forward.5} parent=0 // pred_check
    _
  $region3: #{mlp_forward.5} parent=0 // pred_check_branch
    %11 = sbr.rel (0) target = $region5
  $region4: #{mlp_forward.5} parent=0 // pred_region
    _
  $region5: #{mlp_forward.5} parent=0 // pred_fallthru
    _
  // Predicated region
  $region6: #{mlp_forward.5} parent=0 // pred_check
    _
  $region7: #{mlp_forward.5} parent=0 // pred_check_branch
    %13 = sbr.rel (0) target = $region9
  $region8: #{mlp_forward.5} parent=0 // pred_region
    _
  $region9: #{mlp_forward.5} parent=0 // pred_fallthru
    _
  // Predicated region
  $region10: #{mlp_forward.5} parent=0 // pred_check
    _
  $region11: #{mlp_forward.5} parent=0 // pred_check_branch
    %15 = sbr.rel (0) target = $region13
  $region12: #{mlp_forward.5} parent=0 // pred_region
    _
  $region13: #{mlp_forward.5} parent=0 // pred_fallthru
    _
  // Predicated region
  $region14: #{mlp_forward.5} parent=0 // pred_check
    _
  $region15: #{mlp_forward.5} parent=0 // pred_check_branch
    %17 = sbr.rel (0) target = $region17
  $region16: #{mlp_forward.5} parent=0 // pred_region
    _
  $region17: #{mlp_forward.5} parent=0 // pred_fallthru
    _
  // Predicated region
  $region18: #{mlp_forward.5} parent=0 // pred_check
    _
  $region19: #{mlp_forward.5} parent=0 // pred_check_branch
    %19 = sbr.rel (0) target = $region21
  $region20: #{mlp_forward.5} parent=0 // pred_region
    _
  $region21: #{mlp_forward.5} parent=0 // pred_fallthru
    _
  %v21 = vld [vmem:[%s0] sm:$0xff]
  %v22 = vld [vmem:[%s0 + $0x8] sm:$0xff]
  %v23 = vld [vmem:[%s0 + $0x10] sm:$0xff]
  %v24 = vld [vmem:[%s0 + $0x18] sm:$0xff]
  %v25 = vld [vmem:[%s0 + $0x20] sm:$0xff]
  %v26 = vld [vmem:[%s0 + $0x28] sm:$0xff]
  %v27 = vld [vmem:[%s0 + $0x30] sm:$0xff]
  %v28 = vld [vmem:[%s0 + $0x38] sm:$0xff]
  %v29 = vld [vmem:[%s1] sm:$0x1]
  %v31 = vlaneseq
  %v32 = vshrl.u32 %v31, 7
  %v33 = vsub.s32 0, %v32
  %v34 = vrot.slane %v29, %v33
  %v36 = vmul.f32 %v21, %v34
  %v37 = vmul.f32 %v22, %v34
  %v38 = vmul.f32 %v23, %v34
  %v39 = vmul.f32 %v24, %v34
  %v40 = vmul.f32 %v25, %v34
  %v41 = vmul.f32 %v26, %v34
  %v42 = vmul.f32 %v27, %v34
  %v43 = vmul.f32 %v28, %v34
  %v44 = vld [vmem:[%s2] sm:$0x1]
  %v46 = vlaneseq
  %v47 = vshrl.u32 %v46, 7
  %v48 = vsub.s32 0, %v47
  %v49 = vrot.slane %v44, %v48
  %v51 = vadd.f32 %v36, %v49
  %v52 = vadd.f32 %v37, %v49
  %v53 = vadd.f32 %v38, %v49
  %v54 = vadd.f32 %v39, %v49
  %v55 = vadd.f32 %v40, %v49
  %v56 = vadd.f32 %v41, %v49
  %v57 = vadd.f32 %v42, %v49
  %v58 = vadd.f32 %v43, %v49
  %vm59 = vcmp.ge.f32.partialorder %v51, 0.0
  %vm60 = vcmp.ge.f32.partialorder %v52, 0.0
  %vm61 = vcmp.ge.f32.partialorder %v53, 0.0
  %vm62 = vcmp.ge.f32.partialorder %v54, 0.0
  %vm63 = vcmp.ge.f32.partialorder %v55, 0.0
  %vm64 = vcmp.ge.f32.partialorder %v56, 0.0
  %vm65 = vcmp.ge.f32.partialorder %v57, 0.0
  %vm66 = vcmp.ge.f32.partialorder %v58, 0.0
  %v67 = vmul.f32 %v51, 0.01
  %v68 = vmul.f32 %v52, 0.01
  %v69 = vmul.f32 %v53, 0.01
  %v70 = vmul.f32 %v54, 0.01
  %v71 = vmul.f32 %v55, 0.01
  %v72 = vmul.f32 %v56, 0.01
  %v73 = vmul.f32 %v57, 0.01
  %v74 = vmul.f32 %v58, 0.01
  %v75 = vsel %vm59, %v51, %v67
  %v76 = vsel %vm60, %v52, %v68
  %v77 = vsel %vm61, %v53, %v69
  %v78 = vsel %vm62, %v54, %v70
  %v79 = vsel %vm63, %v55, %v71
  %v80 = vsel %vm64, %v56, %v72
  %v81 = vsel %vm65, %v57, %v73
  %v82 = vsel %vm66, %v58, %v74
  %v83 = vpack.c.bf16 %v76, %v75
  %v84 = vpack.c.bf16 %v78, %v77
  %v85 = vpack.c.bf16 %v80, %v79
  %v86 = vpack.c.bf16 %v82, %v81
  %v87 = vld [vmem:[%s3] sm:$0xf]
  %v88 = vld [vmem:[%s3 + $0x4] sm:$0xf]
  %v89 = vld [vmem:[%s3 + $0x8] sm:$0xf]
  %v90 = vld [vmem:[%s3 + $0xc] sm:$0xf]
  %v91 = vld [vmem:[%s3 + $0x10] sm:$0xf]
  %v92 = vld [vmem:[%s3 + $0x14] sm:$0xf]
  %v93 = vld [vmem:[%s3 + $0x18] sm:$0xf]
  %v94 = vld [vmem:[%s3 + $0x1c] sm:$0xf]
  %v95 = vld [vmem:[%s3 + $0x20] sm:$0xf]
  %v96 = vld [vmem:[%s3 + $0x24] sm:$0xf]
  %v97 = vld [vmem:[%s3 + $0x28] sm:$0xf]
  %v98 = vld [vmem:[%s3 + $0x2c] sm:$0xf]
  %v99 = vld [vmem:[%s3 + $0x30] sm:$0xf]
  %v100 = vld [vmem:[%s3 + $0x34] sm:$0xf]
  %v101 = vld [vmem:[%s3 + $0x38] sm:$0xf]
  %v102 = vld [vmem:[%s3 + $0x3c] sm:$0xf]
  %v103 = vld [vmem:[%s4] sm:$0x1]
  %v105 = vlaneseq
  %v106 = vshrl.u32 %v105, 7
  %v107 = vsub.s32 0, %v106
  %v108 = vrot.slane %v103, %v107
  %v126 = vunpack.c.l.b16 %v87
  %v127 = vunpack.c.l.b16 %v88
  %v128 = vunpack.c.l.b16 %v89
  %v129 = vunpack.c.l.b16 %v90
  %v130 = vunpack.c.l.b16 %v91
  %v131 = vunpack.c.l.b16 %v92
  %v132 = vunpack.c.l.b16 %v93
  %v133 = vunpack.c.l.b16 %v94
  %v134 = vunpack.c.l.b16 %v95
  %v135 = vunpack.c.l.b16 %v96
  %v136 = vunpack.c.l.b16 %v97
  %v137 = vunpack.c.l.b16 %v98
  %v138 = vunpack.c.l.b16 %v99
  %v139 = vunpack.c.l.b16 %v100
  %v140 = vunpack.c.l.b16 %v101
  %v141 = vunpack.c.l.b16 %v102
  %v142 = vpack.c.b16 %v127, %v126
  %v143 = vpack.c.b16 %v129, %v128
  %v144 = vpack.c.b16 %v131, %v130
  %v145 = vpack.c.b16 %v133, %v132
  %v146 = vpack.c.b16 %v135, %v134
  %v147 = vpack.c.b16 %v137, %v136
  %v148 = vpack.c.b16 %v139, %v138
  %v149 = vpack.c.b16 %v141, %v140
  %158 = vmatprep.subr.bf16.mxu0 0
  %159 = vmatpush1.bf16.msra.mxu0 %v142
  %160 = vmatprep.subr.bf16.mxu0 0
  %161 = vmatpush1.bf16.msra.mxu0 %v143
  %162 = vmatprep.subr.bf16.mxu0 0
  %163 = vmatpush1.bf16.msra.mxu0 %v144
  %164 = vmatprep.subr.bf16.mxu0 0
  %165 = vmatpush1.bf16.msra.mxu0 %v145
  %166 = vmatprep.subr.bf16.mxu0 0
  %167 = vmatpush1.bf16.msra.mxu0 %v146
  %168 = vmatprep.subr.bf16.mxu0 0
  %169 = vmatpush1.bf16.msra.mxu0 %v147
  %170 = vmatprep.subr.bf16.mxu0 0
  %171 = vmatpush1.bf16.msra.mxu0 %v148
  %172 = vmatprep.subr.bf16.mxu0 0
  %173 = vmatpush1.bf16.msra.mxu0 %v149
  %174 = vmatprep.subr.bf16.mxu0 0
  %175 = vmatpush1.bf16.msra.mxu0 0
  %176 = vmatprep.subr.bf16.mxu0 0
  %177 = vmatpush1.bf16.msra.mxu0 0
  %178 = vmatprep.subr.bf16.mxu0 0
  %179 = vmatpush1.bf16.msra.mxu0 0
  %180 = vmatprep.subr.bf16.mxu0 0
  %181 = vmatpush1.bf16.msra.mxu0 0
  %182 = vmatprep.subr.bf16.mxu0 0
  %183 = vmatpush1.bf16.msra.mxu0 0
  %184 = vmatprep.subr.bf16.mxu0 0
  %185 = vmatpush1.bf16.msra.mxu0 0
  %186 = vmatprep.subr.bf16.mxu0 0
  %187 = vmatpush1.bf16.msra.mxu0 0
  %188 = vmatprep.subr.bf16.mxu0 0
  %189 = vmatpush1.bf16.msra.mxu0 0
  %190 = vmatprep.mubr.bf16.mxu0 0
  %191 = vmatmul.mubr.bf16.gmra.mrb[0].mxu0 %v83
  %v192 = vpop.f32.mrb[0].mxu0
  %v193 = vadd.f32 %v108, %v192
  %v194 = vpop.f32.mrb[0].mxu0
  %v195 = vpop.f32.mrb[0].mxu0
  %v196 = vadd.f32 %v108, %v195
  %v197 = vpop.f32.mrb[0].mxu0
  %198 = vmatprep.mubr.bf16.mxu0 0
  %199 = vmatmul.mubr.bf16.gmra.mrb[0].mxu0 %v84
  %v200 = vpop.f32.mrb[0].mxu0
  %v201 = vadd.f32 %v108, %v200
  %v202 = vpop.f32.mrb[0].mxu0
  %v203 = vpop.f32.mrb[0].mxu0
  %v204 = vadd.f32 %v108, %v203
  %v205 = vpop.f32.mrb[0].mxu0
  %206 = vmatprep.mubr.bf16.mxu0 0
  %207 = vmatmul.mubr.bf16.gmra.mrb[0].mxu0 %v85
  %v208 = vpop.f32.mrb[0].mxu0
  %v209 = vadd.f32 %v108, %v208
  %v210 = vpop.f32.mrb[0].mxu0
  %v211 = vpop.f32.mrb[0].mxu0
  %v212 = vadd.f32 %v108, %v211
  %v213 = vpop.f32.mrb[0].mxu0
  %214 = vmatprep.mubr.bf16.mxu0 0
  %215 = vmatmul.mubr.bf16.gmra.mrb[0].mxu0 %v86
  %v216 = vpop.f32.mrb[0].mxu0
  %v217 = vadd.f32 %v108, %v216
  %v218 = vpop.f32.mrb[0].mxu0
  %v219 = vpop.f32.mrb[0].mxu0
  %v220 = vadd.f32 %v108, %v219
  %v221 = vpop.f32.mrb[0].mxu0
  %222 = vdwg.mxu0
  %223 = vst [vmem:[%s5] sm:$0xff] %v193
  %224 = vst [vmem:[%s5 + $0x8] sm:$0xff] %v196
  %225 = vst [vmem:[%s5 + $0x10] sm:$0xff] %v201
  %226 = vst [vmem:[%s5 + $0x18] sm:$0xff] %v204
  %227 = vst [vmem:[%s5 + $0x20] sm:$0xff] %v209
  %228 = vst [vmem:[%s5 + $0x28] sm:$0xff] %v212
  %229 = vst [vmem:[%s5 + $0x30] sm:$0xff] %v217
  %230 = vst [vmem:[%s5 + $0x38] sm:$0xff] %v220
  // Predicated region
  $region22: #{mlp_forward.5} parent=0 // pred_check
    _
  $region23: #{mlp_forward.5} parent=0 // pred_check_branch
    %232 = sbr.rel (0) target = $region25
  $region24: #{mlp_forward.5} parent=0 // pred_region
    _
  $region25: #{mlp_forward.5} parent=0 // pred_fallthru
    _
  // Predicated region
  $region26: #{mlp_forward.5} parent=0 // pred_check
    _
  $region27: #{mlp_forward.5} parent=0 // pred_check_branch
    %234 = sbr.rel (0) target = $region29
  $region28: #{mlp_forward.5} parent=0 // pred_region
    _
  $region29: #{mlp_forward.5} parent=0 // pred_fallthru
    _

// kernel: mlp_forward.3
$region0: #{mlp_forward.3}
  #allocation0 [shape = 'u32[]', space=smem, size = 0x4, offset = 0x4, fixed_abs, tag = 'smem constant byte address 0x4 - core index']
  #allocation1 [shape = 'u32[144,128]{1,0:T(1,128)}', space=vmem, size = 0x12000, scoped, tag = 'internal scratch']
  %s0 = inlined_call_operand.vmem [shape: f32[64,128], index: 0, kind: input, shape index: {}]
  %s1 = inlined_call_operand.vmem [shape: bf16[128,128], index: 1, kind: input, shape index: {}]
  %s2 = inlined_call_operand.vmem [shape: f32[1,128], index: 2, kind: input, shape index: {}]
  %s3 = inlined_call_operand.vmem [shape: f32[64,128], index: 3, kind: output, shape index: {0}]
  %s4 = inlined_call_operand.vmem [shape: f32[1,2,128], index: 4, kind: output, shape index: {1}]
  %5 = xla_tuple %s3, %s4
  %s6 = sld [smem:[#allocation0]]
  $region30: #{mlp_forward.3} parent=0
    _
  %s8 = ssub.s32 1, %s6
  %s9 = scalar_select 0, %s8, %s6
  // Predicated region
  $region2: #{mlp_forward.3} parent=0 // pred_check
    _
  $region3: #{mlp_forward.3} parent=0 // pred_check_branch
    %11 = sbr.rel (0) target = $region5
  $region4: #{mlp_forward.3} parent=0 // pred_region
    _
  $region5: #{mlp_forward.3} parent=0 // pred_fallthru
    _
  // Predicated region
  $region6: #{mlp_forward.3} parent=0 // pred_check
    _
  $region7: #{mlp_forward.3} parent=0 // pred_check_branch
    %13 = sbr.rel (0) target = $region9
  $region8: #{mlp_forward.3} parent=0 // pred_region
    _
  $region9: #{mlp_forward.3} parent=0 // pred_fallthru
    _
  // Predicated region
  $region10: #{mlp_forward.3} parent=0 // pred_check
    _
  $region11: #{mlp_forward.3} parent=0 // pred_check_branch
    %15 = sbr.rel (0) target = $region13
  $region12: #{mlp_forward.3} parent=0 // pred_region
    _
  $region13: #{mlp_forward.3} parent=0 // pred_fallthru
    _
  %v17 = vld [vmem:[%s0] sm:$0xff]
  %v18 = vld [vmem:[%s0 + $0x8] sm:$0xff]
  %v19 = vld [vmem:[%s0 + $0x10] sm:$0xff]
  %v20 = vld [vmem:[%s0 + $0x18] sm:$0xff]
  %v21 = vld [vmem:[%s0 + $0x20] sm:$0xff]
  %v22 = vld [vmem:[%s0 + $0x28] sm:$0xff]
  %v23 = vld [vmem:[%s0 + $0x30] sm:$0xff]
  %v24 = vld [vmem:[%s0 + $0x38] sm:$0xff]
  %v25 = vpack.c.bf16 %v18, %v17
  %v26 = vpack.c.bf16 %v20, %v19
  %v27 = vpack.c.bf16 %v22, %v21
  %v28 = vpack.c.bf16 %v24, %v23
  %v29 = vld [vmem:[%s1] sm:$0xf]
  %v30 = vld [vmem:[%s1 + $0x4] sm:$0xf]
  %v31 = vld [vmem:[%s1 + $0x8] sm:$0xf]
  %v32 = vld [vmem:[%s1 + $0xc] sm:$0xf]
  %v33 = vld [vmem:[%s1 + $0x10] sm:$0xf]
  %v34 = vld [vmem:[%s1 + $0x14] sm:$0xf]
  %v35 = vld [vmem:[%s1 + $0x18] sm:$0xf]
  %v36 = vld [vmem:[%s1 + $0x1c] sm:$0xf]
  %v37 = vld [vmem:[%s1 + $0x20] sm:$0xf]
  %v38 = vld [vmem:[%s1 + $0x24] sm:$0xf]
  %v39 = vld [vmem:[%s1 + $0x28] sm:$0xf]
  %v40 = vld [vmem:[%s1 + $0x2c] sm:$0xf]
  %v41 = vld [vmem:[%s1 + $0x30] sm:$0xf]
  %v42 = vld [vmem:[%s1 + $0x34] sm:$0xf]
  %v43 = vld [vmem:[%s1 + $0x38] sm:$0xf]
  %v44 = vld [vmem:[%s1 + $0x3c] sm:$0xf]
  %v45 = vld [vmem:[%s2] sm:$0x1]
  %v47 = vlaneseq
  %v48 = vshrl.u32 %v47, 7
  %v49 = vsub.s32 0, %v48
  %v50 = vrot.slane %v45, %v49
  %v68 = vunpack.c.l.b16 %v29
  %v69 = vunpack.c.l.b16 %v30
  %v70 = vunpack.c.l.b16 %v31
  %v71 = vunpack.c.l.b16 %v32
  %v72 = vunpack.c.l.b16 %v33
  %v73 = vunpack.c.l.b16 %v34
  %v74 = vunpack.c.l.b16 %v35
  %v75 = vunpack.c.l.b16 %v36
  %v76 = vunpack.c.l.b16 %v37
  %v77 = vunpack.c.l.b16 %v38
  %v78 = vunpack.c.l.b16 %v39
  %v79 = vunpack.c.l.b16 %v40
  %v80 = vunpack.c.l.b16 %v41
  %v81 = vunpack.c.l.b16 %v42
  %v82 = vunpack.c.l.b16 %v43
  %v83 = vunpack.c.l.b16 %v44
  %v84 = vpack.c.b16 %v69, %v68
  %v85 = vpack.c.b16 %v71, %v70
  %v86 = vpack.c.b16 %v73, %v72
  %v87 = vpack.c.b16 %v75, %v74
  %v88 = vpack.c.b16 %v77, %v76
  %v89 = vpack.c.b16 %v79, %v78
  %v90 = vpack.c.b16 %v81, %v80
  %v91 = vpack.c.b16 %v83, %v82
  %100 = vmatprep.subr.bf16.mxu0 0
  %101 = vmatpush1.bf16.msra.mxu0 %v84
  %102 = vmatprep.subr.bf16.mxu0 0
  %103 = vmatpush1.bf16.msra.mxu0 %v85
  %104 = vmatprep.subr.bf16.mxu0 0
  %105 = vmatpush1.bf16.msra.mxu0 %v86
  %106 = vmatprep.subr.bf16.mxu0 0
  %107 = vmatpush1.bf16.msra.mxu0 %v87
  %108 = vmatprep.subr.bf16.mxu0 0
  %109 = vmatpush1.bf16.msra.mxu0 %v88
  %110 = vmatprep.subr.bf16.mxu0 0
  %111 = vmatpush1.bf16.msra.mxu0 %v89
  %112 = vmatprep.subr.bf16.mxu0 0
  %113 = vmatpush1.bf16.msra.mxu0 %v90
  %114 = vmatprep.subr.bf16.mxu0 0
  %115 = vmatpush1.bf16.msra.mxu0 %v91
  %116 = vmatprep.subr.bf16.mxu0 0
  %117 = vmatpush1.bf16.msra.mxu0 0
  %118 = vmatprep.subr.bf16.mxu0 0
  %119 = vmatpush1.bf16.msra.mxu0 0
  %120 = vmatprep.subr.bf16.mxu0 0
  %121 = vmatpush1.bf16.msra.mxu0 0
  %122 = vmatprep.subr.bf16.mxu0 0
  %123 = vmatpush1.bf16.msra.mxu0 0
  %124 = vmatprep.subr.bf16.mxu0 0
  %125 = vmatpush1.bf16.msra.mxu0 0
  %126 = vmatprep.subr.bf16.mxu0 0
  %127 = vmatpush1.bf16.msra.mxu0 0
  %128 = vmatprep.subr.bf16.mxu0 0
  %129 = vmatpush1.bf16.msra.mxu0 0
  %130 = vmatprep.subr.bf16.mxu0 0
  %131 = vmatpush1.bf16.msra.mxu0 0
  %132 = vmatprep.mubr.bf16.mxu0 0
  %133 = vmatmul.mubr.bf16.gmra.mrb[0].mxu0 %v25
  %v134 = vpop.f32.mrb[0].mxu0
  %v135 = vadd.f32 %v50, %v134
  %v136 = vpop.f32.mrb[0].mxu0
  %v137 = vpop.f32.mrb[0].mxu0
  %v138 = vadd.f32 %v50, %v137
  %v139 = vpop.f32.mrb[0].mxu0
  %140 = vmatprep.mubr.bf16.mxu0 0
  %141 = vmatmul.mubr.bf16.gmra.mrb[0].mxu0 %v26
  %v142 = vpop.f32.mrb[0].mxu0
  %v143 = vadd.f32 %v50, %v142
  %v144 = vpop.f32.mrb[0].mxu0
  %v145 = vpop.f32.mrb[0].mxu0
  %v146 = vadd.f32 %v50, %v145
  %v147 = vpop.f32.mrb[0].mxu0
  %148 = vmatprep.mubr.bf16.mxu0 0
  %149 = vmatmul.mubr.bf16.gmra.mrb[0].mxu0 %v27
  %v150 = vpop.f32.mrb[0].mxu0
  %v151 = vadd.f32 %v50, %v150
  %v152 = vpop.f32.mrb[0].mxu0
  %v153 = vpop.f32.mrb[0].mxu0
  %v154 = vadd.f32 %v50, %v153
  %v155 = vpop.f32.mrb[0].mxu0
  %156 = vmatprep.mubr.bf16.mxu0 0
  %157 = vmatmul.mubr.bf16.gmra.mrb[0].mxu0 %v28
  %v158 = vpop.f32.mrb[0].mxu0
  %v159 = vadd.f32 %v50, %v158
  %v160 = vpop.f32.mrb[0].mxu0
  %v161 = vpop.f32.mrb[0].mxu0
  %v162 = vadd.f32 %v50, %v161
  %v163 = vpop.f32.mrb[0].mxu0
  %164 = vdwg.mxu0
  %165 = vst [vmem:[%s3] sm:$0xff] %v135
  %166 = vst [vmem:[%s3 + $0x8] sm:$0xff] %v138
  %167 = vst [vmem:[%s3 + $0x10] sm:$0xff] %v143
  %168 = vst [vmem:[%s3 + $0x18] sm:$0xff] %v146
  %169 = vst [vmem:[%s3 + $0x20] sm:$0xff] %v151
  %170 = vst [vmem:[%s3 + $0x28] sm:$0xff] %v154
  %171 = vst [vmem:[%s3 + $0x30] sm:$0xff] %v159
  %172 = vst [vmem:[%s3 + $0x38] sm:$0xff] %v162
  %v173 = vlaneseq
  %v174 = vshrl.u32 %v173, 7
  %v175 = vadd.s32 %v174, 8
  %v176 = vadd.s32 %v174, 16
  %v177 = vadd.s32 %v174, 24
  %v178 = vadd.s32 %v174, 32
  %v179 = vadd.s32 %v174, 40
  %v180 = vadd.s32 %v174, 48
  %v181 = vadd.s32 %v174, 56
  %s182 = smul.u32 0, 64
  %v183 = vstv %s182
  %v184 = vadd.s32 %v174, %v183
  %v185 = vadd.s32 %v175, %v183
  %v186 = vadd.s32 %v176, %v183
  %v187 = vadd.s32 %v177, %v183
  %v188 = vadd.s32 %v178, %v183
  %v189 = vadd.s32 %v179, %v183
  %v190 = vadd.s32 %v180, %v183
  %v191 = vadd.s32 %v181, %v183
  %vm192 = vcmp.lt.s32.totalorder %v184, 64
  %vm193 = vcmp.lt.s32.totalorder %v185, 64
  %vm194 = vcmp.lt.s32.totalorder %v186, 64
  %vm195 = vcmp.lt.s32.totalorder %v187, 64
  %vm196 = vcmp.lt.s32.totalorder %v188, 64
  %vm197 = vcmp.lt.s32.totalorder %v189, 64
  %vm198 = vcmp.lt.s32.totalorder %v190, 64
  %vm199 = vcmp.lt.s32.totalorder %v191, 64
  %v200 = vsel %vm192, %v135, 0.0
  %v201 = vsel %vm193, %v138, 0.0
  %v202 = vsel %vm194, %v143, 0.0
  %v203 = vsel %vm195, %v146, 0.0
  %v204 = vsel %vm196, %v151, 0.0
  %v205 = vsel %vm197, %v154, 0.0
  %v206 = vsel %vm198, %v159, 0.0
  %v207 = vsel %vm199, %v162, 0.0
  %v208 = vadd.f32 %v200, %v201
  %v209 = vadd.f32 %v208, %v202
  %v210 = vadd.f32 %v209, %v203
  %v211 = vadd.f32 %v210, %v204
  %v212 = vadd.f32 %v211, %v205
  %v213 = vadd.f32 %v212, %v206
  %v214 = vadd.f32 %v213, %v207
  %v215 = vrot.slane %v214, 4
  %v216 = vadd.f32 %v214, %v215
  %v217 = vrot.slane %v216, 2
  %v218 = vadd.f32 %v216, %v217
  %v219 = vrot.slane %v218, 1
  %v220 = vadd.f32 %v218, %v219
  %v221 = vmul.f32 %v200, %v135
  %v222 = vmul.f32 %v201, %v138
  %v223 = vmul.f32 %v202, %v143
  %v224 = vmul.f32 %v203, %v146
  %v225 = vmul.f32 %v204, %v151
  %v226 = vmul.f32 %v205, %v154
  %v227 = vmul.f32 %v206, %v159
  %v228 = vmul.f32 %v207, %v162
  %v229 = vadd.f32 %v221, %v222
  %v230 = vadd.f32 %v229, %v223
  %v231 = vadd.f32 %v230, %v224
  %v232 = vadd.f32 %v231, %v225
  %v233 = vadd.f32 %v232, %v226
  %v234 = vadd.f32 %v233, %v227
  %v235 = vadd.f32 %v234, %v228
  %v236 = vrot.slane %v235, 4
  %v237 = vadd.f32 %v235, %v236
  %v238 = vrot.slane %v237, 2
  %v239 = vadd.f32 %v237, %v238
  %v240 = vrot.slane %v239, 1
  %v241 = vadd.f32 %v239, %v240
  %vm242 = vcmask 1040384
  %v243 = vsel %vm242, %v220, %v241
  %244 = vst [vmem:[%s4] sm:$0x3] %v243
  // Predicated region
  $region14: #{mlp_forward.3} parent=0 // pred_check
    _
  $region15: #{mlp_forward.3} parent=0 // pred_check_branch
    %246 = sbr.rel (0) target = $region17
  $region16: #{mlp_forward.3} parent=0 // pred_region
    _
  $region17: #{mlp_forward.3} parent=0 // pred_fallthru
    _
  // Predicated region
  $region18: #{mlp_forward.3} parent=0 // pred_check
    _
  $region19: #{mlp_forward.3} parent=0 // pred_check_branch
    %248 = sbr.rel (0) target = $region21
  $region20: #{mlp_forward.3} parent=0 // pred_region
    _
  $region21: #{mlp_forward.3} parent=0 // pred_fallthru
    _
  // Predicated region
  $region22: #{mlp_forward.3} parent=0 // pred_check
    _
  $region23: #{mlp_forward.3} parent=0 // pred_check_branch
    %250 = sbr.rel (0) target = $region25
  $region24: #{mlp_forward.3} parent=0 // pred_region
    _
  $region25: #{mlp_forward.3} parent=0 // pred_fallthru
    _
  // Predicated region
  $region26: #{mlp_forward.3} parent=0 // pred_check
    _
  $region27: #{mlp_forward.3} parent=0 // pred_check_branch
    %252 = sbr.rel (0) target = $region29
  $region28: #{mlp_forward.3} parent=0 // pred_region
    _
  $region29: #{mlp_forward.3} parent=0 // pred_fallthru
    _

// kernel: mlp_forward.4
$region0: #{mlp_forward.4}
  #allocation0 [shape = 'u32[]', space=smem, size = 0x4, offset = 0x4, fixed_abs, tag = 'smem constant byte address 0x4 - core index']
  #allocation1 [shape = 'u32[144,128]{1,0:T(1,128)}', space=vmem, size = 0x12000, scoped, tag = 'internal scratch']
  %s0 = inlined_call_operand.vmem [shape: f32[64,128], index: 0, kind: input, shape index: {}]
  %s1 = inlined_call_operand.vmem [shape: f32[1,128], index: 1, kind: input, shape index: {}]
  %s2 = inlined_call_operand.vmem [shape: f32[1,128], index: 2, kind: input, shape index: {}]
  %s3 = inlined_call_operand.vmem [shape: bf16[128,128], index: 3, kind: input, shape index: {}]
  %s4 = inlined_call_operand.vmem [shape: f32[1,128], index: 4, kind: input, shape index: {}]
  %s5 = inlined_call_operand.vmem [shape: f32[64,128], index: 5, kind: output, shape index: {0}]
  %s6 = inlined_call_operand.vmem [shape: f32[1,2,128], index: 6, kind: output, shape index: {1}]
  %7 = xla_tuple %s5, %s6
  %s8 = sld [smem:[#allocation0]]
  $region38: #{mlp_forward.4} parent=0
    _
  %s10 = ssub.s32 1, %s8
  %s11 = scalar_select 0, %s10, %s8
  // Predicated region
  $region2: #{mlp_forward.4} parent=0 // pred_check
    _
  $region3: #{mlp_forward.4} parent=0 // pred_check_branch
    %13 = sbr.rel (0) target = $region5
  $region4: #{mlp_forward.4} parent=0 // pred_region
    _
  $region5: #{mlp_forward.4} parent=0 // pred_fallthru
    _
  // Predicated region
  $region6: #{mlp_forward.4} parent=0 // pred_check
    _
  $region7: #{mlp_forward.4} parent=0 // pred_check_branch
    %15 = sbr.rel (0) target = $region9
  $region8: #{mlp_forward.4} parent=0 // pred_region
    _
  $region9: #{mlp_forward.4} parent=0 // pred_fallthru
    _
  // Predicated region
  $region10: #{mlp_forward.4} parent=0 // pred_check
    _
  $region11: #{mlp_forward.4} parent=0 // pred_check_branch
    %17 = sbr.rel (0) target = $region13
  $region12: #{mlp_forward.4} parent=0 // pred_region
    _
  $region13: #{mlp_forward.4} parent=0 // pred_fallthru
    _
  // Predicated region
  $region14: #{mlp_forward.4} parent=0 // pred_check
    _
  $region15: #{mlp_forward.4} parent=0 // pred_check_branch
    %19 = sbr.rel (0) target = $region17
  $region16: #{mlp_forward.4} parent=0 // pred_region
    _
  $region17: #{mlp_forward.4} parent=0 // pred_fallthru
    _
  // Predicated region
  $region18: #{mlp_forward.4} parent=0 // pred_check
    _
  $region19: #{mlp_forward.4} parent=0 // pred_check_branch
    %21 = sbr.rel (0) target = $region21
  $region20: #{mlp_forward.4} parent=0 // pred_region
    _
  $region21: #{mlp_forward.4} parent=0 // pred_fallthru
    _
  %v23 = vld [vmem:[%s0] sm:$0xff]
  %v24 = vld [vmem:[%s0 + $0x8] sm:$0xff]
  %v25 = vld [vmem:[%s0 + $0x10] sm:$0xff]
  %v26 = vld [vmem:[%s0 + $0x18] sm:$0xff]
  %v27 = vld [vmem:[%s0 + $0x20] sm:$0xff]
  %v28 = vld [vmem:[%s0 + $0x28] sm:$0xff]
  %v29 = vld [vmem:[%s0 + $0x30] sm:$0xff]
  %v30 = vld [vmem:[%s0 + $0x38] sm:$0xff]
  %v31 = vld [vmem:[%s1] sm:$0x1]
  %v33 = vlaneseq
  %v34 = vshrl.u32 %v33, 7
  %v35 = vsub.s32 0, %v34
  %v36 = vrot.slane %v31, %v35
  %v38 = vmul.f32 %v23, %v36
  %v39 = vmul.f32 %v24, %v36
  %v40 = vmul.f32 %v25, %v36
  %v41 = vmul.f32 %v26, %v36
  %v42 = vmul.f32 %v27, %v36
  %v43 = vmul.f32 %v28, %v36
  %v44 = vmul.f32 %v29, %v36
  %v45 = vmul.f32 %v30, %v36
  %v46 = vld [vmem:[%s2] sm:$0x1]
  %v48 = vlaneseq
  %v49 = vshrl.u32 %v48, 7
  %v50 = vsub.s32 0, %v49
  %v51 = vrot.slane %v46, %v50
  %v53 = vadd.f32 %v38, %v51
  %v54 = vadd.f32 %v39, %v51
  %v55 = vadd.f32 %v40, %v51
  %v56 = vadd.f32 %v41, %v51
  %v57 = vadd.f32 %v42, %v51
  %v58 = vadd.f32 %v43, %v51
  %v59 = vadd.f32 %v44, %v51
  %v60 = vadd.f32 %v45, %v51
  %vm61 = vcmp.ge.f32.partialorder %v53, 0.0
  %vm62 = vcmp.ge.f32.partialorder %v54, 0.0
  %vm63 = vcmp.ge.f32.partialorder %v55, 0.0
  %vm64 = vcmp.ge.f32.partialorder %v56, 0.0
  %vm65 = vcmp.ge.f32.partialorder %v57, 0.0
  %vm66 = vcmp.ge.f32.partialorder %v58, 0.0
  %vm67 = vcmp.ge.f32.partialorder %v59, 0.0
  %vm68 = vcmp.ge.f32.partialorder %v60, 0.0
  %v69 = vmul.f32 %v53, 0.01
  %v70 = vmul.f32 %v54, 0.01
  %v71 = vmul.f32 %v55, 0.01
  %v72 = vmul.f32 %v56, 0.01
  %v73 = vmul.f32 %v57, 0.01
  %v74 = vmul.f32 %v58, 0.01
  %v75 = vmul.f32 %v59, 0.01
  %v76 = vmul.f32 %v60, 0.01
  %v77 = vsel %vm61, %v53, %v69
  %v78 = vsel %vm62, %v54, %v70
  %v79 = vsel %vm63, %v55, %v71
  %v80 = vsel %vm64, %v56, %v72
  %v81 = vsel %vm65, %v57, %v73
  %v82 = vsel %vm66, %v58, %v74
  %v83 = vsel %vm67, %v59, %v75
  %v84 = vsel %vm68, %v60, %v76
  %v85 = vpack.c.bf16 %v78, %v77
  %v86 = vpack.c.bf16 %v80, %v79
  %v87 = vpack.c.bf16 %v82, %v81
  %v88 = vpack.c.bf16 %v84, %v83
  %v89 = vld [vmem:[%s3] sm:$0xf]
  %v90 = vld [vmem:[%s3 + $0x4] sm:$0xf]
  %v91 = vld [vmem:[%s3 + $0x8] sm:$0xf]
  %v92 = vld [vmem:[%s3 + $0xc] sm:$0xf]
  %v93 = vld [vmem:[%s3 + $0x10] sm:$0xf]
  %v94 = vld [vmem:[%s3 + $0x14] sm:$0xf]
  %v95 = vld [vmem:[%s3 + $0x18] sm:$0xf]
  %v96 = vld [vmem:[%s3 + $0x1c] sm:$0xf]
  %v97 = vld [vmem:[%s3 + $0x20] sm:$0xf]
  %v98 = vld [vmem:[%s3 + $0x24] sm:$0xf]
  %v99 = vld [vmem:[%s3 + $0x28] sm:$0xf]
  %v100 = vld [vmem:[%s3 + $0x2c] sm:$0xf]
  %v101 = vld [vmem:[%s3 + $0x30] sm:$0xf]
  %v102 = vld [vmem:[%s3 + $0x34] sm:$0xf]
  %v103 = vld [vmem:[%s3 + $0x38] sm:$0xf]
  %v104 = vld [vmem:[%s3 + $0x3c] sm:$0xf]
  %v105 = vld [vmem:[%s4] sm:$0x1]
  %v107 = vlaneseq
  %v108 = vshrl.u32 %v107, 7
  %v109 = vsub.s32 0, %v108
  %v110 = vrot.slane %v105, %v109
  %v128 = vunpack.c.l.b16 %v89
  %v129 = vunpack.c.l.b16 %v90
  %v130 = vunpack.c.l.b16 %v91
  %v131 = vunpack.c.l.b16 %v92
  %v132 = vunpack.c.l.b16 %v93
  %v133 = vunpack.c.l.b16 %v94
  %v134 = vunpack.c.l.b16 %v95
  %v135 = vunpack.c.l.b16 %v96
  %v136 = vunpack.c.l.b16 %v97
  %v137 = vunpack.c.l.b16 %v98
  %v138 = vunpack.c.l.b16 %v99
  %v139 = vunpack.c.l.b16 %v100
  %v140 = vunpack.c.l.b16 %v101
  %v141 = vunpack.c.l.b16 %v102
  %v142 = vunpack.c.l.b16 %v103
  %v143 = vunpack.c.l.b16 %v104
  %v144 = vpack.c.b16 %v129, %v128
  %v145 = vpack.c.b16 %v131, %v130
  %v146 = vpack.c.b16 %v133, %v132
  %v147 = vpack.c.b16 %v135, %v134
  %v148 = vpack.c.b16 %v137, %v136
  %v149 = vpack.c.b16 %v139, %v138
  %v150 = vpack.c.b16 %v141, %v140
  %v151 = vpack.c.b16 %v143, %v142
  %160 = vmatprep.subr.bf16.mxu0 0
  %161 = vmatpush1.bf16.msra.mxu0 %v144
  %162 = vmatprep.subr.bf16.mxu0 0
  %163 = vmatpush1.bf16.msra.mxu0 %v145
  %164 = vmatprep.subr.bf16.mxu0 0
  %165 = vmatpush1.bf16.msra.mxu0 %v146
  %166 = vmatprep.subr.bf16.mxu0 0
  %167 = vmatpush1.bf16.msra.mxu0 %v147
  %168 = vmatprep.subr.bf16.mxu0 0
  %169 = vmatpush1.bf16.msra.mxu0 %v148
  %170 = vmatprep.subr.bf16.mxu0 0
  %171 = vmatpush1.bf16.msra.mxu0 %v149
  %172 = vmatprep.subr.bf16.mxu0 0
  %173 = vmatpush1.bf16.msra.mxu0 %v150
  %174 = vmatprep.subr.bf16.mxu0 0
  %175 = vmatpush1.bf16.msra.mxu0 %v151
  %176 = vmatprep.subr.bf16.mxu0 0
  %177 = vmatpush1.bf16.msra.mxu0 0
  %178 = vmatprep.subr.bf16.mxu0 0
  %179 = vmatpush1.bf16.msra.mxu0 0
  %180 = vmatprep.subr.bf16.mxu0 0
  %181 = vmatpush1.bf16.msra.mxu0 0
  %182 = vmatprep.subr.bf16.mxu0 0
  %183 = vmatpush1.bf16.msra.mxu0 0
  %184 = vmatprep.subr.bf16.mxu0 0
  %185 = vmatpush1.bf16.msra.mxu0 0
  %186 = vmatprep.subr.bf16.mxu0 0
  %187 = vmatpush1.bf16.msra.mxu0 0
  %188 = vmatprep.subr.bf16.mxu0 0
  %189 = vmatpush1.bf16.msra.mxu0 0
  %190 = vmatprep.subr.bf16.mxu0 0
  %191 = vmatpush1.bf16.msra.mxu0 0
  %192 = vmatprep.mubr.bf16.mxu0 0
  %193 = vmatmul.mubr.bf16.gmra.mrb[0].mxu0 %v85
  %v194 = vpop.f32.mrb[0].mxu0
  %v195 = vadd.f32 %v110, %v194
  %v196 = vpop.f32.mrb[0].mxu0
  %v197 = vpop.f32.mrb[0].mxu0
  %v198 = vadd.f32 %v110, %v197
  %v199 = vpop.f32.mrb[0].mxu0
  %200 = vmatprep.mubr.bf16.mxu0 0
  %201 = vmatmul.mubr.bf16.gmra.mrb[0].mxu0 %v86
  %v202 = vpop.f32.mrb[0].mxu0
  %v203 = vadd.f32 %v110, %v202
  %v204 = vpop.f32.mrb[0].mxu0
  %v205 = vpop.f32.mrb[0].mxu0
  %v206 = vadd.f32 %v110, %v205
  %v207 = vpop.f32.mrb[0].mxu0
  %208 = vmatprep.mubr.bf16.mxu0 0
  %209 = vmatmul.mubr.bf16.gmra.mrb[0].mxu0 %v87
  %v210 = vpop.f32.mrb[0].mxu0
  %v211 = vadd.f32 %v110, %v210
  %v212 = vpop.f32.mrb[0].mxu0
  %v213 = vpop.f32.mrb[0].mxu0
  %v214 = vadd.f32 %v110, %v213
  %v215 = vpop.f32.mrb[0].mxu0
  %216 = vmatprep.mubr.bf16.mxu0 0
  %217 = vmatmul.mubr.bf16.gmra.mrb[0].mxu0 %v88
  %v218 = vpop.f32.mrb[0].mxu0
  %v219 = vadd.f32 %v110, %v218
  %v220 = vpop.f32.mrb[0].mxu0
  %v221 = vpop.f32.mrb[0].mxu0
  %v222 = vadd.f32 %v110, %v221
  %v223 = vpop.f32.mrb[0].mxu0
  %224 = vdwg.mxu0
  %225 = vst [vmem:[%s5] sm:$0xff] %v195
  %226 = vst [vmem:[%s5 + $0x8] sm:$0xff] %v198
  %227 = vst [vmem:[%s5 + $0x10] sm:$0xff] %v203
  %228 = vst [vmem:[%s5 + $0x18] sm:$0xff] %v206
  %229 = vst [vmem:[%s5 + $0x20] sm:$0xff] %v211
  %230 = vst [vmem:[%s5 + $0x28] sm:$0xff] %v214
  %231 = vst [vmem:[%s5 + $0x30] sm:$0xff] %v219
  %232 = vst [vmem:[%s5 + $0x38] sm:$0xff] %v222
  %v233 = vlaneseq
  %v234 = vshrl.u32 %v233, 7
  %v235 = vadd.s32 %v234, 8
  %v236 = vadd.s32 %v234, 16
  %v237 = vadd.s32 %v234, 24
  %v238 = vadd.s32 %v234, 32
  %v239 = vadd.s32 %v234, 40
  %v240 = vadd.s32 %v234, 48
  %v241 = vadd.s32 %v234, 56
  %s242 = smul.u32 0, 64
  %v243 = vstv %s242
  %v244 = vadd.s32 %v234, %v243
  %v245 = vadd.s32 %v235, %v243
  %v246 = vadd.s32 %v236, %v243
  %v247 = vadd.s32 %v237, %v243
  %v248 = vadd.s32 %v238, %v243
  %v249 = vadd.s32 %v239, %v243
  %v250 = vadd.s32 %v240, %v243
  %v251 = vadd.s32 %v241, %v243
  %vm252 = vcmp.lt.s32.totalorder %v244, 64
  %vm253 = vcmp.lt.s32.totalorder %v245, 64
  %vm254 = vcmp.lt.s32.totalorder %v246, 64
  %vm255 = vcmp.lt.s32.totalorder %v247, 64
  %vm256 = vcmp.lt.s32.totalorder %v248, 64
  %vm257 = vcmp.lt.s32.totalorder %v249, 64
  %vm258 = vcmp.lt.s32.totalorder %v250, 64
  %vm259 = vcmp.lt.s32.totalorder %v251, 64
  %v260 = vsel %vm252, %v195, 0.0
  %v261 = vsel %vm253, %v198, 0.0
  %v262 = vsel %vm254, %v203, 0.0
  %v263 = vsel %vm255, %v206, 0.0
  %v264 = vsel %vm256, %v211, 0.0
  %v265 = vsel %vm257, %v214, 0.0
  %v266 = vsel %vm258, %v219, 0.0
  %v267 = vsel %vm259, %v222, 0.0
  %v268 = vadd.f32 %v260, %v261
  %v269 = vadd.f32 %v268, %v262
  %v270 = vadd.f32 %v269, %v263
  %v271 = vadd.f32 %v270, %v264
  %v272 = vadd.f32 %v271, %v265
  %v273 = vadd.f32 %v272, %v266
  %v274 = vadd.f32 %v273, %v267
  %v275 = vrot.slane %v274, 4
  %v276 = vadd.f32 %v274, %v275
  %v277 = vrot.slane %v276, 2
  %v278 = vadd.f32 %v276, %v277
  %v279 = vrot.slane %v278, 1
  %v280 = vadd.f32 %v278, %v279
  %v281 = vmul.f32 %v260, %v195
  %v282 = vmul.f32 %v261, %v198
  %v283 = vmul.f32 %v262, %v203
  %v284 = vmul.f32 %v263, %v206
  %v285 = vmul.f32 %v264, %v211
  %v286 = vmul.f32 %v265, %v214
  %v287 = vmul.f32 %v266, %v219
  %v288 = vmul.f32 %v267, %v222
  %v289 = vadd.f32 %v281, %v282
  %v290 = vadd.f32 %v289, %v283
  %v291 = vadd.f32 %v290, %v284
  %v292 = vadd.f32 %v291, %v285
  %v293 = vadd.f32 %v292, %v286
  %v294 = vadd.f32 %v293, %v287
  %v295 = vadd.f32 %v294, %v288
  %v296 = vrot.slane %v295, 4
  %v297 = vadd.f32 %v295, %v296
  %v298 = vrot.slane %v297, 2
  %v299 = vadd.f32 %v297, %v298
  %v300 = vrot.slane %v299, 1
  %v301 = vadd.f32 %v299, %v300
  %vm302 = vcmask 1040384
  %v303 = vsel %vm302, %v280, %v301
  %304 = vst [vmem:[%s6] sm:$0x3] %v303
  // Predicated region
  $region22: #{mlp_forward.4} parent=0 // pred_check
    _
  $region23: #{mlp_forward.4} parent=0 // pred_check_branch
    %306 = sbr.rel (0) target = $region25
  $region24: #{mlp_forward.4} parent=0 // pred_region
    _
  $region25: #{mlp_forward.4} parent=0 // pred_fallthru
    _
  // Predicated region
  $region26: #{mlp_forward.4} parent=0 // pred_check
    _
  $region27: #{mlp_forward.4} parent=0 // pred_check_branch
    %308 = sbr.rel (0) target = $region29
  $region28: #{mlp_forward.4} parent=0 // pred_region
    _
  $region29: #{mlp_forward.4} parent=0 // pred_fallthru
    _
  // Predicated region
  $region30: #{mlp_forward.4} parent=0 // pred_check
    _
  $region31: #{mlp_forward.4} parent=0 // pred_check_branch
    %310 = sbr.rel (0) target = $region33
  $region32: #{mlp_forward.4} parent=0 // pred_region
    _
  $region33: #{mlp_forward.4} parent=0 // pred_fallthru
    _
  // Predicated region
  $region34: #{mlp_forward.4} parent=0 // pred_check
    _
  $region35: #{mlp_forward.4} parent=0 // pred_check_branch
    %312 = sbr.rel (0) target = $region37
  $region36: #{mlp_forward.4} parent=0 // pred_region
    _
  $region37: #{mlp_forward.4} parent=0 // pred_fallthru
    _

</llo_original>
